<compile_context>
chip_gen: v7x
topology: tpu7x:2x2x1
jax: 0.10.0
libtpu: 0.0.40
codegen_flags: <defaults>
</compile_context>

<pallas_src>
import functools

import jax
import jax.numpy as jnp
from jax.experimental import pallas as pl
from jax.experimental.pallas import tpu as pltpu

LANES = 128
SUBLANES = 8
MIN_TILE = SUBLANES * LANES            # 1024 elems = one f32 vreg tile
BLOCK_ROWS = 256                       # sublane rows per block (large inputs)
BLOCK_COLS = 1024                      # lane-dense last dim (8 vregs wide)
BLOCK_ELEMS = BLOCK_ROWS * BLOCK_COLS  # 262144 elems = 1 MiB f32 per operand
NBITS = 8
VMEM_LIMIT = 32 * 1024 * 1024          # headroom on v5e (16 MiB default scoped)


# ---------------------------------------------------------------- kernels ---

def _add_kernel(x1_ref, x2_ref, o_ref):
    o_ref[...] = x1_ref[...] + x2_ref[...]


def _add_observe_kernel(x1_ref, x2_ref, o_ref, max_ref, min_ref,
                        max_sc, min_sc):
    y = x1_ref[...] + x2_ref[...]
    o_ref[...] = y

    @pl.when(pl.program_id(0) == 0)
    def _():
        max_sc[...] = jnp.full_like(max_sc, -jnp.inf)
        min_sc[...] = jnp.full_like(min_sc, jnp.inf)

    # Cheap per-step sublane reduce into lane-wide running stats.
    max_sc[...] = jnp.maximum(max_sc[...], jnp.max(y, axis=0, keepdims=True))
    min_sc[...] = jnp.minimum(min_sc[...], jnp.min(y, axis=0, keepdims=True))

    # Cross-lane reduce + (1,1) store only once, on the last grid step.
    @pl.when(pl.program_id(0) == pl.num_programs(0) - 1)
    def _():
        max_ref[...] = jnp.max(max_sc[...], keepdims=True)
        min_ref[...] = jnp.min(min_sc[...], keepdims=True)


def _add_quant_kernel(scale_ref, x1_ref, x2_ref, o_ref, *, is_uint8):
    y = x1_ref[...] + x2_ref[...]
    scale = scale_ref[0]
    inv_scale = scale_ref[1]            # exact: scale is a power of two
    # torch `.int().float()` truncates toward zero -> jnp.trunc
    q = jnp.trunc(y * scale)
    if is_uint8:
        q = jnp.clip(q, 0.0, 2.0 ** NBITS - 1.0)
    else:
        q = jnp.clip(q, -(2.0 ** (NBITS - 1)), 2.0 ** (NBITS - 1) - 1.0)
    o_ref[...] = q * inv_scale


# ------------------------------------------------------------- slab layout --

def _layout(total):
    """Pick (padded_total, cols, block_rows) for a lane-dense 2D slab."""
    if total >= BLOCK_ELEMS:
        padded = ((total + BLOCK_ELEMS - 1) // BLOCK_ELEMS) * BLOCK_ELEMS
        return padded, BLOCK_COLS, BLOCK_ROWS
    padded = ((total + MIN_TILE - 1) // MIN_TILE) * MIN_TILE
    return padded, LANES, padded // LANES        # single whole-array block


def _to_slab(x, padded, cols, edge_pad=False):
    flat = x.reshape(-1)
    pad = padded - flat.size
    if pad:
        # edge padding replicates a real element (keeps max/min stats exact)
        flat = jnp.pad(flat, (0, pad), mode="edge" if edge_pad else "constant")
    return flat.reshape(padded // cols, cols)


def _from_slab(slab, total, shape):
    return slab.reshape(-1)[:total].reshape(shape)


# ----------------------------------------------------------------- wrappers --

def fixed_add_float(x1, x2):
    total = x1.size
    padded, cols, brows = _layout(total)
    x1s = _to_slab(x1, padded, cols)
    x2s = _to_slab(x2, padded, cols)
    rows = padded // cols
    blk = pl.BlockSpec((brows, cols), lambda i: (i, 0))
    out = pl.pallas_call(
        _add_kernel,
        out_shape=jax.ShapeDtypeStruct((rows, cols), x1s.dtype),
        grid_spec=pltpu.PrefetchScalarGridSpec(
            num_scalar_prefetch=0, grid=(rows // brows,),
            in_specs=[blk, blk], out_specs=blk),
        compiler_params=pltpu.CompilerParams(
            dimension_semantics=("parallel",),
            vmem_limit_bytes=VMEM_LIMIT),
    )(x1s, x2s)
    return _from_slab(out, total, x1.shape)


def fixed_add_observe(x1, x2):
    """Returns (y, batch_max, batch_min)."""
    total = x1.size
    padded, cols, brows = _layout(total)
    x1s = _to_slab(x1, padded, cols, edge_pad=True)
    x2s = _to_slab(x2, padded, cols, edge_pad=True)
    rows = padded // cols
    blk = pl.BlockSpec((brows, cols), lambda i: (i, 0))
    stat_spec = pl.BlockSpec((1, 1), lambda i: (0, 0))
    y, y_max, y_min = pl.pallas_call(
        _add_observe_kernel,
        out_shape=(jax.ShapeDtypeStruct((rows, cols), x1s.dtype),
                   jax.ShapeDtypeStruct((1, 1), jnp.float32),
                   jax.ShapeDtypeStruct((1, 1), jnp.float32)),
        grid_spec=pltpu.PrefetchScalarGridSpec(
            num_scalar_prefetch=0, grid=(rows // brows,),
            in_specs=[blk, blk],
            out_specs=(blk, stat_spec, stat_spec),
            scratch_shapes=[pltpu.VMEM((1, cols), jnp.float32),
                            pltpu.VMEM((1, cols), jnp.float32)]),
        compiler_params=pltpu.CompilerParams(
            dimension_semantics=("arbitrary",),   # stats carry across steps
            vmem_limit_bytes=VMEM_LIMIT),
    )(x1s, x2s)
    return _from_slab(y, total, x1.shape), y_max[0, 0], y_min[0, 0]


def fixed_add_quant(x1, x2, scale, qtype="int8"):
    total = x1.size
    padded, cols, brows = _layout(total)
    x1s = _to_slab(x1, padded, cols)
    x2s = _to_slab(x2, padded, cols)
    rows = padded // cols
    # index maps receive the scalar-prefetch ref as a trailing positional arg
    blk = pl.BlockSpec((brows, cols), lambda i, s: (i, 0))
    scale = jnp.asarray(scale, jnp.float32)
    scale_arr = jnp.stack([scale, 1.0 / scale])   # [scale, inv_scale], exact
    out = pl.pallas_call(
        functools.partial(_add_quant_kernel, is_uint8=(qtype == "uint8")),
        out_shape=jax.ShapeDtypeStruct((rows, cols), x1s.dtype),
        grid_spec=pltpu.PrefetchScalarGridSpec(
            num_scalar_prefetch=1, grid=(rows // brows,),
            in_specs=[blk, blk], out_specs=blk),
        compiler_params=pltpu.CompilerParams(
            dimension_semantics=("parallel",),
            vmem_limit_bytes=VMEM_LIMIT),
    )(scale_arr, x1s, x2s)
    return _from_slab(out, total, x1.shape)


# ----------------------------------------------------------- observer glue --

class MinMaxObserver:
    """JAX mirror of the torch MinMaxObserver (scalar glue in plain JAX)."""

    def __init__(self, N=NBITS):
        self.min_val = jnp.float32(jnp.inf)
        self.max_val = jnp.float32(-jnp.inf)
        self.scale = 1.0
        self.dtype = "int8"
        self.N = N

    def observe_minmax(self, batch_max, batch_min, dtype, eps=1e-10):
        self.dtype = dtype
        self.max_val = jnp.maximum(self.max_val, batch_max)
        self.min_val = jnp.minimum(self.min_val, batch_min)
        self.scale = self.get_scale(dtype, eps)
        return self.scale

    def get_scale(self, dtype, eps=1e-10):
        if dtype == "uint8":
            max_val = jnp.maximum(self.max_val, 0.0)
        elif dtype == "int8":
            max_val = 2.0 * jnp.maximum(-self.min_val, self.max_val)
        else:
            raise NotImplementedError(dtype)
        return 2.0 ** (self.N - jnp.ceil(jnp.log2(max_val + eps)))


class FixedAdd:
    """JAX/Pallas mirror of the PyTorch FixedAdd module (forward only)."""

    def __init__(self, mode="float", act_type="int8"):
        self.mode = mode
        self.act_type = act_type
        self.activation_observer = MinMaxObserver()
        self.scale = None
        self.qtype = act_type
        # TODO(synk): backward gradient observer/quantizer hooks are training-
        # only autograd hooks and have no forward-pass Pallas equivalent.

    def __call__(self, x1, x2):
        if self.mode == "float":
            return fixed_add_float(x1, x2)
        if self.mode == "observe":
            y, y_max, y_min = fixed_add_observe(x1, x2)
            self.scale = self.activation_observer.observe_minmax(
                y_max, y_min, self.act_type)
            self.qtype = self.act_type
            return y
        if self.mode == "quant":
            assert self.scale is not None, "run observe mode first"
            return fixed_add_quant(x1, x2, self.scale, self.qtype)
        raise NotImplementedError(self.mode)


# -------------------------------------------------------------------- main ---

if __name__ == "__main__":
    key = jax.random.PRNGKey(0)
    k1, k2 = jax.random.split(key)
    shape = (2, 4, 16, 16)  # NCHW
    x1 = jax.random.normal(k1, shape, dtype=jnp.float32)
    x2 = jax.random.normal(k2, shape, dtype=jnp.float32)

    # mode='float'
    m = FixedAdd(mode="float")
    y_float = jax.block_until_ready(m(x1, x2))
    assert jnp.allclose(y_float, x1 + x2, atol=1e-6)

    # mode='observe'
    m.mode = "observe"
    y_obs = jax.block_until_ready(m(x1, x2))
    assert jnp.allclose(y_obs, x1 + x2, atol=1e-6)
    y_ref = x1 + x2
    mv = 2.0 * jnp.maximum(-jnp.min(y_ref), jnp.max(y_ref))
    ref_scale = 2.0 ** (NBITS - jnp.ceil(jnp.log2(mv + 1e-10)))
    assert jnp.allclose(m.scale, ref_scale)

    # mode='quant' (uses scale from observe pass)
    m.mode = "quant"
    y_quant = jax.block_until_ready(m(x1, x2))
    ref_q = jnp.clip(jnp.trunc((x1 + x2) * m.scale), -128.0, 127.0) / m.scale
    assert jnp.allclose(y_quant, ref_q, atol=1e-6)

    # Larger, non-block-multiple shape: exercises the padded multi-block path.
    shape2 = (4, 32, 56, 56)  # 401408 elems -> 2 blocks of (256, 1024) + pad
    a1 = jax.random.normal(k1, shape2, dtype=jnp.float32)
    a2 = jax.random.normal(k2, shape2, dtype=jnp.float32)
    assert jnp.allclose(jax.block_until_ready(fixed_add_float(a1, a2)),
                        a1 + a2, atol=1e-6)
    y2, b_max, b_min = fixed_add_observe(a1, a2)
    r2 = a1 + a2
    assert jnp.allclose(jax.block_until_ready(y2), r2, atol=1e-6)
    assert jnp.allclose(b_max, jnp.max(r2)) and jnp.allclose(b_min, jnp.min(r2))
    mv2 = 2.0 * jnp.maximum(-b_min, b_max)
    s2 = 2.0 ** (NBITS - jnp.ceil(jnp.log2(mv2 + 1e-10)))
    q2 = jax.block_until_ready(fixed_add_quant(a1, a2, s2))
    assert jnp.allclose(q2, jnp.clip(jnp.trunc(r2 * s2), -128.0, 127.0) / s2,
                        atol=1e-6)

    print("KERNEL_OK")
</pallas_src>

<mosaic_0001>
module attributes {stable_mosaic.version = 11 : i64} {
  func.func @_add_kernel(%arg0: i32, %arg1: memref<16x128xf32, #tpu.memory_space<vmem>>, %arg2: memref<16x128xf32, #tpu.memory_space<vmem>>, %arg3: memref<16x128xf32, #tpu.memory_space<vmem>>) attributes {dimension_semantics = [#tpu.dimension_semantics<parallel>], iteration_bounds = array<i64: 1>, scalar_prefetch = 0 : i64, scratch_operands = 0 : i64, tpu.core_type = #tpu.core_type<tc>, window_params = [{transform_indices = @transform_0, window_bounds = array<i64: 16, 128>}, {transform_indices = @transform_1, window_bounds = array<i64: 16, 128>}, {transform_indices = @transform_2, window_bounds = array<i64: 16, 128>}]} {
    %c0 = arith.constant 0 : index
    %c0_0 = arith.constant 0 : index
    %0 = vector.load %arg1[%c0, %c0_0] : memref<16x128xf32, #tpu.memory_space<vmem>>, vector<16x128xf32>
    %c0_1 = arith.constant 0 : index
    %c0_2 = arith.constant 0 : index
    %1 = vector.load %arg2[%c0_1, %c0_2] : memref<16x128xf32, #tpu.memory_space<vmem>>, vector<16x128xf32>
    %2 = arith.addf %0, %1 : vector<16x128xf32>
    %c0_3 = arith.constant 0 : index
    %c0_4 = arith.constant 0 : index
    %3 = vector.load %arg3[%c0_3, %c0_4] : memref<16x128xf32, #tpu.memory_space<vmem>>, vector<16x128xf32>
    tpu.vector_store %arg3[%c0_3, %c0_4], %2 {strides = array<i32>} : memref<16x128xf32, #tpu.memory_space<vmem>>, vector<16x128xf32>,
    return
  }
  func.func @transform_0(%arg0: i32) -> (i32, i32) {
    %c0_i32 = arith.constant 0 : i32
    %c0_i32_0 = arith.constant 0 : i32
    return %arg0, %c0_i32 : i32, i32
  }
  func.func @transform_1(%arg0: i32) -> (i32, i32) {
    %c0_i32 = arith.constant 0 : i32
    %c0_i32_0 = arith.constant 0 : i32
    return %arg0, %c0_i32 : i32, i32
  }
  func.func @transform_2(%arg0: i32) -> (i32, i32) {
    %c0_i32 = arith.constant 0 : i32
    %c0_i32_0 = arith.constant 0 : i32
    return %arg0, %c0_i32 : i32, i32
  }
}

</mosaic_0001>

<llo_original>
// kernel: tpu_custom_call.1
$region0: #{tpu_custom_call.1}
  #allocation0 [shape = 'u32[]', space=smem, size = 0x4, offset = 0x4, fixed_abs, tag = 'smem constant byte address 0x4 - core index']
  #allocation1 [shape = 'u32[144,128]{1,0:T(1,128)}', space=vmem, size = 0x12000, scoped, tag = 'internal scratch']
  %s0 = inlined_call_operand.hbm [shape: f32[16,128], index: 0, kind: input, shape index: {}]
  %s1 = inlined_call_operand.hbm [shape: f32[16,128], index: 1, kind: input, shape index: {}]
  %s2 = inlined_call_operand.hbm [shape: f32[16,128], index: 2, kind: output, shape index: {}]
  %s3 = sld [smem:[#allocation0]]
  $region26: #{tpu_custom_call.1} parent=0
    _
  %s5 = ssub.s32 1, %s3
  %s6 = scalar_select 0, %s5, %s3
  $region1: #{tpu_custom_call.1} parent=0
    #allocation2 [shape = 'u8[8192]{0}', space=vmem, size = 0x2000, scoped, tag = 'input window, operand 0, single buffered']
    #allocation3 [shape = 's32[1]{0}', space=sflag, size = 0x4, scoped, tag = 'scoped memory for tpu_custom_call.1']
    #allocation4 [shape = 's32[1]{0}', space=sflag, size = 0x4, scoped, tag = 'scoped memory for tpu_custom_call.1']
    #allocation5 [shape = 'u8[8192]{0}', space=vmem, size = 0x2000, scoped, tag = 'input window, operand 1, single buffered']
    #allocation6 [shape = 's32[1]{0}', space=sflag, size = 0x4, scoped, tag = 'scoped memory for tpu_custom_call.1']
    #allocation7 [shape = 'u8[8192]{0}', space=vmem, size = 0x2000, scoped, tag = 'output window, operand 0, single buffered']
    %7 = vsyncpa [#allocation3], 0
    %8 = vsyncpa [#allocation6], 0
    %9 = vsyncpa [#allocation4], 0
    // Predicated region
    $region2: #{tpu_custom_call.1} parent=1 // pred_check
      _
    $region3: #{tpu_custom_call.1} parent=1 // pred_check_branch
      %11 = sbr.rel (0) target = $region5
    $region4: #{tpu_custom_call.1} parent=1 // pred_region
      %s13 = ssub.s32 256, 256
      %14 = vsyncadd [#allocation3], %s13
      %s15 = sshll.u32 [#allocation2], 4
      %s16 = int_to_ptr.vmem [resolvable:$true] %s15
      %21 = dma.hbm_to_vmem [thread:$0]  %s0, 256, %s16, [#allocation3], 128, 128, 8
    $region5: #{tpu_custom_call.1} parent=1 // pred_fallthru
      _
    // Predicated region
    $region6: #{tpu_custom_call.1} parent=1 // pred_check
      _
    $region7: #{tpu_custom_call.1} parent=1 // pred_check_branch
      %23 = sbr.rel (0) target = $region9
    $region8: #{tpu_custom_call.1} parent=1 // pred_region
      %s25 = ssub.s32 256, 256
      %26 = vsyncadd [#allocation6], %s25
      %s27 = sshll.u32 [#allocation5], 4
      %s28 = int_to_ptr.vmem [resolvable:$true] %s27
      %33 = dma.hbm_to_vmem [thread:$0]  %s1, 256, %s28, [#allocation6], 128, 128, 8
    $region9: #{tpu_custom_call.1} parent=1 // pred_fallthru
      _
    // Predicated region
    $region10: #{tpu_custom_call.1} parent=1 // pred_check
      _
    $region11: #{tpu_custom_call.1} parent=1 // pred_check_branch
      %35 = sbr.rel (0) target = $region13
    $region12: #{tpu_custom_call.1} parent=1 // pred_region
      %36 = dma.done [#allocation3], 256
    $region13: #{tpu_custom_call.1} parent=1 // pred_fallthru
      _
    // Predicated region
    $region14: #{tpu_custom_call.1} parent=1 // pred_check
      _
    $region15: #{tpu_custom_call.1} parent=1 // pred_check_branch
      %38 = sbr.rel (0) target = $region17
    $region16: #{tpu_custom_call.1} parent=1 // pred_region
      %39 = dma.done [#allocation6], 256
    $region17: #{tpu_custom_call.1} parent=1 // pred_fallthru
      _
    %v40 = vld [vmem:[#allocation2] sm:$0xff]
    %v41 = vld [vmem:[#allocation2 + $0x8] sm:$0xff]
    %v42 = vld [vmem:[#allocation5] sm:$0xff]
    %v43 = vld [vmem:[#allocation5 + $0x8] sm:$0xff]
    %v44 = vadd.f32 %v40, %v42
    %v45 = vadd.f32 %v41, %v43
    %46 = vst [vmem:[#allocation7] sm:$0xff] %v44
    %47 = vst [vmem:[#allocation7 + $0x8] sm:$0xff] %v45
    // Predicated region
    $region18: #{tpu_custom_call.1} parent=1 // pred_check
      _
    $region19: #{tpu_custom_call.1} parent=1 // pred_check_branch
      %49 = sbr.rel (0) target = $region21
    $region20: #{tpu_custom_call.1} parent=1 // pred_region
      %s51 = ssub.s32 256, 256
      %52 = vsyncadd [#allocation4], %s51
      %s53 = sshll.u32 [#allocation7], 4
      %s54 = int_to_ptr.vmem [resolvable:$true] %s53
      %59 = dma.vmem_to_hbm [thread:$0]  %s54, 256, %s2, [#allocation4], 128, 128, 8
    $region21: #{tpu_custom_call.1} parent=1 // pred_fallthru
      _
    // Predicated region
    $region22: #{tpu_custom_call.1} parent=1 // pred_check
      _
    $region23: #{tpu_custom_call.1} parent=1 // pred_check_branch
      %61 = sbr.rel (0) target = $region25
    $region24: #{tpu_custom_call.1} parent=1 // pred_region
      %62 = dma.done [#allocation4], 256
    $region25: #{tpu_custom_call.1} parent=1 // pred_fallthru
      _
    %63 = vsyncpa [#allocation3], 1
    %64 = vsyncpa [#allocation6], 1
    %65 = vsyncpa [#allocation4], 1

</llo_original>
